<compile_context>
chip_gen: v7x
topology: tpu7x:2x2x1
jax: 0.10.0
libtpu: 0.0.40
codegen_flags: <defaults>
</compile_context>

<pallas_src>
import functools

import jax
import jax.numpy as jnp
from jax.experimental import pallas as pl
from jax.experimental.pallas import tpu as pltpu


def _round_up(x, m):
    return ((x + m - 1) // m) * m


# --------------------------------------------------------------------------- #
# Kernel
# --------------------------------------------------------------------------- #
def _self_attention_kernel(x_ref, wqkv_ref, bqkv_ref, o_ref, *, seq, e, ep,
                           mxu_dtype):
    """One grid step processes a (Bt, S, E) slab of the batch.

    x_ref:    (Bt, S, E)    input features (already cast to mxu_dtype)
    wqkv_ref: (E, 3*Ep)     fused, transposed Q/K/V weights (out dim padded)
    bqkv_ref: (1, 3*Ep)     fused, zero-padded biases (f32)
    o_ref:    (Bt, S, E)    output (unpadded)
    """
    bt = x_ref.shape[0]
    rows = bt * seq

    def to_mxu(t):
        return t if mxu_dtype is None else t.astype(mxu_dtype)

    # ---- fused QKV projection: one (Bt*S, E) x (E, 3*Ep) MXU pass ----------
    # Collapsing (Bt, S) keeps the 256-wide MXU full instead of Bt skinny
    # matmuls with only S rows each.
    x2 = x_ref[...].reshape(rows, e)
    qkv = jnp.dot(x2, wqkv_ref[...], preferred_element_type=jnp.float32)
    qkv = qkv + bqkv_ref[...]                       # f32 bias on f32 accum
    qkv = qkv.reshape(bt, seq, 3 * ep)
    q = qkv[:, :, :ep]                              # 128-lane aligned slices
    k = qkv[:, :, ep:2 * ep]
    v = qkv[:, :, 2 * ep:]

    # ---- scores = Q @ K^T (batched contraction, no materialized transpose) -
    scores = jax.lax.dot_general(
        to_mxu(q), to_mxu(k), (((2,), (2,)), ((0,), (0,))),
        preferred_element_type=jnp.float32)          # (Bt, S, S)

    # ---- numerically stable softmax statistics (f32 VPU/EUP math) ----------
    scores = scores - jnp.max(scores, axis=-1, keepdims=True)
    p = jnp.exp(scores)
    denom = jnp.sum(p, axis=-1, keepdims=True)       # (Bt, S, 1)

    # ---- out = (P @ V) * 1/denom  --------------------------------------------
    # Normalizing after the PV matmul scales an (Bt,S,Ep) slab instead of the
    # (Bt,S,S) probability matrix and drops one live (S,S) f32 temporary.
    pv = jax.lax.dot_general(
        to_mxu(p), to_mxu(v), (((2,), (1,)), ((0,), (0,))),
        preferred_element_type=jnp.float32)           # (Bt, S, Ep)
    out = pv * pl.reciprocal(denom, approx=True)      # EUP vrcp, ~free

    o_ref[...] = out[:, :, :e].astype(o_ref.dtype)    # drop padded lanes


# --------------------------------------------------------------------------- #
# One-time parameter preparation (do NOT run per forward call)
# --------------------------------------------------------------------------- #
def prepare_self_attention_params(wq, bq, wk, bk, wv, bv, *,
                                  mxu_dtype=jnp.bfloat16):
    """Transpose to (in, out), pad the output dim of each projection to a
    128-lane multiple, fuse Q/K/V along the output dim and pre-cast weights."""
    E = wq.shape[0]
    Ep = _round_up(E, 128)
    pad = Ep - E

    def prep_w(w):                       # PyTorch (out, in) -> (in, out_padded)
        wt = w.T
        return jnp.pad(wt, ((0, 0), (0, pad))) if pad else wt

    def prep_b(b):
        return jnp.pad(b, (0, pad)) if pad else b

    wqkv = jnp.concatenate([prep_w(wq), prep_w(wk), prep_w(wv)], axis=1)
    bqkv = jnp.concatenate([prep_b(bq), prep_b(bk), prep_b(bv)]).reshape(1, 3 * Ep)
    if mxu_dtype is not None:
        wqkv = wqkv.astype(mxu_dtype)    # weights cast once, stay resident
    return {"wqkv": wqkv, "bqkv": bqkv.astype(jnp.float32),
            "embed": E, "embed_padded": Ep, "mxu_dtype": mxu_dtype}


# --------------------------------------------------------------------------- #
# VMEM-aware tiling heuristics
# --------------------------------------------------------------------------- #
def _vmem_capacity_bytes():
    try:
        return int(pltpu.get_tpu_info().vmem_capacity_bytes)
    except Exception:
        return 64 * 1024 * 1024          # v7x per-TC (smallest) fallback


def _step_vmem_bytes(bt, seq, e, ep, x_itemsize, w_itemsize):
    """Conservative per-grid-step VMEM estimate (blocks + main intermediates)."""
    rows = bt * seq
    m = max(w_itemsize, 2)
    b = 2 * rows * e * x_itemsize        # x block (double-buffered)
    b += 2 * rows * e * 4                # out block (double-buffered, f32)
    b += 2 * e * 3 * ep * w_itemsize     # fused weights (assume 2 bufs worst case)
    b += 2 * 3 * ep * 4                  # bias
    b += rows * 3 * ep * 4               # qkv f32 accumulator
    b += rows * 3 * ep * m               # q/k/v MXU-dtype copies
    b += 2 * bt * seq * seq * 4          # scores + p (f32)
    b += bt * seq * seq * m              # p MXU-dtype copy
    b += rows * ep * 4                   # pv accumulator
    return b


def _pick_batch_tile(B, seq, e, ep, x_itemsize, w_itemsize, vmem_cap):
    """Largest divisor of B that (a) keeps >= 2 grid steps when B > 1 (v7x
    megacore + pipelining), (b) stays under a row target that amortizes the
    ~0.35us per-step overhead, and (c) fits a conservative VMEM budget."""
    target_rows = 2048 if vmem_cap >= 96 * 1024 * 1024 else 512
    budget = int(vmem_cap * 0.55)
    best = 1
    for bt in range(1, B + 1):
        if B % bt:
            continue
        if B > 1 and B // bt < 2:
            continue                      # never collapse the grid to one step
        if bt * seq > max(target_rows, seq):
            continue
        if _step_vmem_bytes(bt, seq, e, ep, x_itemsize, w_itemsize) > budget:
            continue
        best = bt
    return best


# --------------------------------------------------------------------------- #
# Forward wrapper
# --------------------------------------------------------------------------- #
def self_attention(feature, params):
    """feature: (B, S, E).  params: output of prepare_self_attention_params."""
    B, S, E = feature.shape
    assert E == params["embed"]
    Ep = params["embed_padded"]
    mxu_dtype = params["mxu_dtype"]
    wqkv, bqkv = params["wqkv"], params["bqkv"]

    # Pre-cast the streaming input once (halves kernel DMA bytes, removes the
    # per-step VPU cast).  Ideally the upstream layer already produces bf16.
    x = feature if mxu_dtype is None else feature.astype(mxu_dtype)

    vmem_cap = _vmem_capacity_bytes()
    Bt = _pick_batch_tile(B, S, E, Ep, x.dtype.itemsize, wqkv.dtype.itemsize,
                          vmem_cap)
    grid = (B // Bt,)

    step_bytes = _step_vmem_bytes(Bt, S, E, Ep, x.dtype.itemsize,
                                  wqkv.dtype.itemsize)
    # Per-generation scoped-VMEM limit: <= ~40 MiB on v7x (64 MiB/TC), up to
    # ~80 MiB on v5e/v6e (128 MiB), never far beyond what this kernel needs.
    vmem_limit = int(min(vmem_cap * 5 // 8,
                         max(2 * step_bytes, 32 * 1024 * 1024)))

    kernel = functools.partial(_self_attention_kernel, seq=S, e=E, ep=Ep,
                               mxu_dtype=mxu_dtype)

    def run(single_buffer_weights):
        def const_spec(shape):
            # Grid-invariant operands: request a single VMEM buffer (the
            # default double-buffering would waste a full copy of the weights).
            if single_buffer_weights:
                return pl.BlockSpec(shape, lambda b: (0,) * len(shape),
                                    pipeline_mode=pl.Buffered(buffer_count=1))
            return pl.BlockSpec(shape, lambda b: (0,) * len(shape))

        return pl.pallas_call(
            kernel,
            out_shape=jax.ShapeDtypeStruct((B, S, E), feature.dtype),
            grid_spec=pltpu.PrefetchScalarGridSpec(
                num_scalar_prefetch=0,
                grid=grid,
                in_specs=[
                    pl.BlockSpec((Bt, S, E), lambda b: (b, 0, 0)),
                    const_spec((E, 3 * Ep)),
                    const_spec((1, 3 * Ep)),
                ],
                out_specs=pl.BlockSpec((Bt, S, E), lambda b: (b, 0, 0)),
            ),
            compiler_params=pltpu.CompilerParams(
                dimension_semantics=("parallel",),
                vmem_limit_bytes=vmem_limit,
            ),
        )(x, wqkv, bqkv)

    try:
        return run(True)          # attempt single-buffered invariant weights
    except Exception:             # pipeline_mode unsupported in this JAX build
        return run(False)


# --------------------------------------------------------------------------- #
# Reference + test
# --------------------------------------------------------------------------- #
def _reference(feature, wq, bq, wk, bk, wv, bv):
    q = feature @ wq.T + bq
    k = feature @ wk.T + bk
    v = feature @ wv.T + bv
    scores = jnp.einsum("bqe,bke->bqk", q, k)
    attn = jax.nn.softmax(scores, axis=-1)
    return jnp.einsum("bqk,bke->bqe", attn, v)


if __name__ == "__main__":
    B, S, E = 2, 8, 32  # batch, seq, embed_size

    key = jax.random.PRNGKey(0)
    keys = jax.random.split(key, 7)
    feature = jax.random.normal(keys[0], (B, S, E), dtype=jnp.float32)

    # Deterministic parameter init (PyTorch nn.Linear-like scale).
    scale = 1.0 / jnp.sqrt(E)
    wq = jax.random.uniform(keys[1], (E, E), jnp.float32, -scale, scale)
    bq = jax.random.uniform(keys[2], (E,), jnp.float32, -scale, scale)
    wk = jax.random.uniform(keys[3], (E, E), jnp.float32, -scale, scale)
    bk = jax.random.uniform(keys[4], (E,), jnp.float32, -scale, scale)
    wv = jax.random.uniform(keys[5], (E, E), jnp.float32, -scale, scale)
    bv = jax.random.uniform(keys[6], (E,), jnp.float32, -scale, scale)

    ref = _reference(feature, wq, bq, wk, bk, wv, bv)

    # Default fast path: bf16 MXU operands, f32 accumulation + f32 softmax.
    params_bf16 = prepare_self_attention_params(wq, bq, wk, bk, wv, bv)
    out = self_attention(feature, params_bf16)
    jax.block_until_ready(out)
    assert out.shape == (B, S, E)
    # bf16 rounding of the MXU operands on the *unscaled* attention scores
    # dominates the error budget; the f32 path below validates the algorithm
    # at tight tolerance.
    assert jnp.allclose(out, ref, atol=3e-2, rtol=3e-2), "bf16 path mismatch"

    # Exact-precision path (f32 MXU operands); only the EUP approximate
    # reciprocal on the softmax denominator differs from the reference.
    params_f32 = prepare_self_attention_params(wq, bq, wk, bk, wv, bv,
                                               mxu_dtype=None)
    out_f32 = self_attention(feature, params_f32)
    jax.block_until_ready(out_f32)
    assert jnp.allclose(out_f32, ref, atol=5e-3, rtol=5e-3), "f32 path mismatch"

    print("KERNEL_OK")
</pallas_src>

<mosaic_0001>
module attributes {stable_mosaic.version = 11 : i64} {
  func.func @_self_attention_kernel(%arg0: i32, %arg1: memref<1x8x32xbf16, #tpu.memory_space<vmem>>, %arg2: memref<32x384xbf16, #tpu.memory_space<vmem>>, %arg3: memref<1x384xf32, #tpu.memory_space<vmem>>, %arg4: memref<1x8x32xf32, #tpu.memory_space<vmem>>) attributes {dimension_semantics = [#tpu.dimension_semantics<parallel>], iteration_bounds = array<i64: 2>, scalar_prefetch = 0 : i64, scratch_operands = 0 : i64, tpu.core_type = #tpu.core_type<tc>, window_params = [{transform_indices = @transform_0, window_bounds = array<i64: 1, 8, 32>}, {pipeline_mode = #tpu.pipeline_mode<synchronous>, transform_indices = @transform_1, window_bounds = array<i64: 32, 384>}, {pipeline_mode = #tpu.pipeline_mode<synchronous>, transform_indices = @transform_2, window_bounds = array<i64: 1, 384>}, {transform_indices = @transform_3, window_bounds = array<i64: 1, 8, 32>}]} {
    %c0 = arith.constant 0 : index
    %c0_0 = arith.constant 0 : index
    %c0_1 = arith.constant 0 : index
    %0 = vector.load %arg1[%c0, %c0_0, %c0_1] : memref<1x8x32xbf16, #tpu.memory_space<vmem>>, vector<1x8x32xbf16>
    %1 = vector.shape_cast %0 : vector<1x8x32xbf16> to vector<8x32xbf16>
    %c0_2 = arith.constant 0 : index
    %c0_3 = arith.constant 0 : index
    %2 = vector.load %arg2[%c0_2, %c0_3] : memref<32x384xbf16, #tpu.memory_space<vmem>>, vector<32x384xbf16>
    %cst = arith.constant dense<0.000000e+00> : vector<8x384xf32>
    %3 = tpu.matmul %1, %2, %cst {dimension_numbers = #tpu.dot_dimension_numbers<[1], [0], [0], [1], [0, 0, 1, 1], [], []>} : vector<8x32xbf16>, vector<32x384xbf16>, vector<8x384xf32> -> vector<8x384xf32>
    %c0_4 = arith.constant 0 : index
    %c0_5 = arith.constant 0 : index
    %4 = vector.load %arg3[%c0_4, %c0_5] : memref<1x384xf32, #tpu.memory_space<vmem>>, vector<1x384xf32>
    %5 = vector.broadcast %4 : vector<1x384xf32> to vector<8x384xf32>
    %6 = arith.addf %3, %5 : vector<8x384xf32>
    %7 = vector.shape_cast %6 : vector<8x384xf32> to vector<1x8x384xf32>
    %8 = vector.extract_strided_slice %7 {offsets = [0, 0, 0], sizes = [1, 8, 128], strides = [1, 1, 1]} : vector<1x8x384xf32> to vector<1x8x128xf32>
    %9 = vector.extract_strided_slice %7 {offsets = [0, 0, 128], sizes = [1, 8, 128], strides = [1, 1, 1]} : vector<1x8x384xf32> to vector<1x8x128xf32>
    %10 = vector.extract_strided_slice %7 {offsets = [0, 0, 256], sizes = [1, 8, 128], strides = [1, 1, 1]} : vector<1x8x384xf32> to vector<1x8x128xf32>
    %11 = arith.truncf %8 : vector<1x8x128xf32> to vector<1x8x128xbf16>
    %12 = arith.truncf %9 : vector<1x8x128xf32> to vector<1x8x128xbf16>
    %cst_6 = arith.constant dense<0.000000e+00> : vector<1x8x8xf32>
    %13 = tpu.matmul %11, %12, %cst_6 {dimension_numbers = #tpu.dot_dimension_numbers<[2], [2], [1], [1], [0, 0, 0, 1, 1, 1], [0], [0]>} : vector<1x8x128xbf16>, vector<1x8x128xbf16>, vector<1x8x8xf32> -> vector<1x8x8xf32>
    %cst_7 = arith.constant dense<0xFF800000> : vector<1x8xf32>
    %14 = vector.multi_reduction <maximumf>, %13, %cst_7 [2] : vector<1x8x8xf32> to vector<1x8xf32>
    %15 = vector.shape_cast %14 : vector<1x8xf32> to vector<1x8x1xf32>
    %16 = vector.broadcast %15 : vector<1x8x1xf32> to vector<1x8x8xf32>
    %17 = arith.subf %13, %16 : vector<1x8x8xf32>
    %18 = math.exp %17 : vector<1x8x8xf32>
    %cst_8 = arith.constant dense<0.000000e+00> : vector<1x8xf32>
    %19 = vector.multi_reduction <add>, %18, %cst_8 [2] : vector<1x8x8xf32> to vector<1x8xf32>
    %20 = vector.shape_cast %19 : vector<1x8xf32> to vector<1x8x1xf32>
    %21 = arith.truncf %18 : vector<1x8x8xf32> to vector<1x8x8xbf16>
    %22 = arith.truncf %10 : vector<1x8x128xf32> to vector<1x8x128xbf16>
    %cst_9 = arith.constant dense<0.000000e+00> : vector<1x8x128xf32>
    %23 = tpu.matmul %21, %22, %cst_9 {dimension_numbers = #tpu.dot_dimension_numbers<[2], [1], [1], [2], [0, 0, 0, 1, 1, 2], [0], [0]>} : vector<1x8x8xbf16>, vector<1x8x128xbf16>, vector<1x8x128xf32> -> vector<1x8x128xf32>
    %24 = tpu.reciprocal %20 {approx = true} : vector<1x8x1xf32> -> vector<1x8x1xf32>
    %25 = vector.broadcast %24 : vector<1x8x1xf32> to vector<1x8x128xf32>
    %26 = arith.mulf %23, %25 : vector<1x8x128xf32>
    %27 = vector.extract_strided_slice %26 {offsets = [0, 0, 0], sizes = [1, 8, 32], strides = [1, 1, 1]} : vector<1x8x128xf32> to vector<1x8x32xf32>
    %c0_10 = arith.constant 0 : index
    %c0_11 = arith.constant 0 : index
    %c0_12 = arith.constant 0 : index
    %28 = vector.load %arg4[%c0_10, %c0_11, %c0_12] : memref<1x8x32xf32, #tpu.memory_space<vmem>>, vector<1x8x32xf32>
    tpu.vector_store %arg4[%c0_10, %c0_11, %c0_12], %27 {strides = array<i32>} : memref<1x8x32xf32, #tpu.memory_space<vmem>>, vector<1x8x32xf32>,
    return
  }
  func.func @transform_0(%arg0: i32) -> (i32, i32, i32) {
    %c0_i32 = arith.constant 0 : i32
    %c0_i32_0 = arith.constant 0 : i32
    %c0_i32_1 = arith.constant 0 : i32
    return %arg0, %c0_i32, %c0_i32_0 : i32, i32, i32
  }
  func.func @transform_1(%arg0: i32) -> (i32, i32) {
    %c0_i32 = arith.constant 0 : i32
    %c0_i32_0 = arith.constant 0 : i32
    %c0_i32_1 = arith.constant 0 : i32
    return %c0_i32, %c0_i32_0 : i32, i32
  }
  func.func @transform_2(%arg0: i32) -> (i32, i32) {
    %c0_i32 = arith.constant 0 : i32
    %c0_i32_0 = arith.constant 0 : i32
    %c0_i32_1 = arith.constant 0 : i32
    return %c0_i32, %c0_i32_0 : i32, i32
  }
  func.func @transform_3(%arg0: i32) -> (i32, i32, i32) {
    %c0_i32 = arith.constant 0 : i32
    %c0_i32_0 = arith.constant 0 : i32
    %c0_i32_1 = arith.constant 0 : i32
    return %arg0, %c0_i32, %c0_i32_0 : i32, i32, i32
  }
}

module attributes {stable_mosaic.version = 11 : i64} {
  func.func @_self_attention_kernel(%arg0: i32, %arg1: memref<1x8x32xbf16, #tpu.memory_space<vmem>>, %arg2: memref<32x384xbf16, #tpu.memory_space<vmem>>, %arg3: memref<1x384xf32, #tpu.memory_space<vmem>>, %arg4: memref<1x8x32xf32, #tpu.memory_space<vmem>>) attributes {dimension_semantics = [#tpu.dimension_semantics<parallel>], iteration_bounds = array<i64: 2>, scalar_prefetch = 0 : i64, scratch_operands = 0 : i64, tpu.core_type = #tpu.core_type<tc>, window_params = [{transform_indices = @transform_0, window_bounds = array<i64: 1, 8, 32>}, {pipeline_mode = #tpu.pipeline_mode<synchronous>, transform_indices = @transform_1, window_bounds = array<i64: 32, 384>}, {pipeline_mode = #tpu.pipeline_mode<synchronous>, transform_indices = @transform_2, window_bounds = array<i64: 1, 384>}, {transform_indices = @transform_3, window_bounds = array<i64: 1, 8, 32>}]} {
    %c0 = arith.constant 0 : index
    %c0_0 = arith.constant 0 : index
    %c0_1 = arith.constant 0 : index
    %0 = vector.load %arg1[%c0, %c0_0, %c0_1] : memref<1x8x32xbf16, #tpu.memory_space<vmem>>, vector<1x8x32xbf16>
    %1 = vector.shape_cast %0 : vector<1x8x32xbf16> to vector<8x32xbf16>
    %c0_2 = arith.constant 0 : index
    %c0_3 = arith.constant 0 : index
    %2 = vector.load %arg2[%c0_2, %c0_3] : memref<32x384xbf16, #tpu.memory_space<vmem>>, vector<32x384xbf16>
    %cst = arith.constant dense<0.000000e+00> : vector<8x384xf32>
    %3 = tpu.matmul %1, %2, %cst {dimension_numbers = #tpu.dot_dimension_numbers<[1], [0], [0], [1], [0, 0, 1, 1], [], []>} : vector<8x32xbf16>, vector<32x384xbf16>, vector<8x384xf32> -> vector<8x384xf32>
    %c0_4 = arith.constant 0 : index
    %c0_5 = arith.constant 0 : index
    %4 = vector.load %arg3[%c0_4, %c0_5] : memref<1x384xf32, #tpu.memory_space<vmem>>, vector<1x384xf32>
    %5 = vector.broadcast %4 : vector<1x384xf32> to vector<8x384xf32>
    %6 = arith.addf %3, %5 : vector<8x384xf32>
    %7 = vector.shape_cast %6 : vector<8x384xf32> to vector<1x8x384xf32>
    %8 = vector.extract_strided_slice %7 {offsets = [0, 0, 0], sizes = [1, 8, 128], strides = [1, 1, 1]} : vector<1x8x384xf32> to vector<1x8x128xf32>
    %9 = vector.extract_strided_slice %7 {offsets = [0, 0, 128], sizes = [1, 8, 128], strides = [1, 1, 1]} : vector<1x8x384xf32> to vector<1x8x128xf32>
    %10 = vector.extract_strided_slice %7 {offsets = [0, 0, 256], sizes = [1, 8, 128], strides = [1, 1, 1]} : vector<1x8x384xf32> to vector<1x8x128xf32>
    %11 = arith.truncf %8 : vector<1x8x128xf32> to vector<1x8x128xbf16>
    %12 = arith.truncf %9 : vector<1x8x128xf32> to vector<1x8x128xbf16>
    %cst_6 = arith.constant dense<0.000000e+00> : vector<1x8x8xf32>
    %13 = tpu.matmul %11, %12, %cst_6 {dimension_numbers = #tpu.dot_dimension_numbers<[2], [2], [1], [1], [0, 0, 0, 1, 1, 1], [0], [0]>} : vector<1x8x128xbf16>, vector<1x8x128xbf16>, vector<1x8x8xf32> -> vector<1x8x8xf32>
    %cst_7 = arith.constant dense<0xFF800000> : vector<1x8xf32>
    %14 = vector.multi_reduction <maximumf>, %13, %cst_7 [2] : vector<1x8x8xf32> to vector<1x8xf32>
    %15 = vector.shape_cast %14 : vector<1x8xf32> to vector<1x8x1xf32>
    %16 = vector.broadcast %15 : vector<1x8x1xf32> to vector<1x8x8xf32>
    %17 = arith.subf %13, %16 : vector<1x8x8xf32>
    %18 = math.exp %17 : vector<1x8x8xf32>
    %cst_8 = arith.constant dense<0.000000e+00> : vector<1x8xf32>
    %19 = vector.multi_reduction <add>, %18, %cst_8 [2] : vector<1x8x8xf32> to vector<1x8xf32>
    %20 = vector.shape_cast %19 : vector<1x8xf32> to vector<1x8x1xf32>
    %21 = arith.truncf %18 : vector<1x8x8xf32> to vector<1x8x8xbf16>
    %22 = arith.truncf %10 : vector<1x8x128xf32> to vector<1x8x128xbf16>
    %cst_9 = arith.constant dense<0.000000e+00> : vector<1x8x128xf32>
    %23 = tpu.matmul %21, %22, %cst_9 {dimension_numbers = #tpu.dot_dimension_numbers<[2], [1], [1], [2], [0, 0, 0, 1, 1, 2], [0], [0]>} : vector<1x8x8xbf16>, vector<1x8x128xbf16>, vector<1x8x128xf32> -> vector<1x8x128xf32>
    %24 = tpu.reciprocal %20 {approx = true} : vector<1x8x1xf32> -> vector<1x8x1xf32>
    %25 = vector.broadcast %24 : vector<1x8x1xf32> to vector<1x8x128xf32>
    %26 = arith.mulf %23, %25 : vector<1x8x128xf32>
    %27 = vector.extract_strided_slice %26 {offsets = [0, 0, 0], sizes = [1, 8, 32], strides = [1, 1, 1]} : vector<1x8x128xf32> to vector<1x8x32xf32>
    %c0_10 = arith.constant 0 : index
    %c0_11 = arith.constant 0 : index
    %c0_12 = arith.constant 0 : index
    %28 = vector.load %arg4[%c0_10, %c0_11, %c0_12] : memref<1x8x32xf32, #tpu.memory_space<vmem>>, vector<1x8x32xf32>
    tpu.vector_store %arg4[%c0_10, %c0_11, %c0_12], %27 {strides = array<i32>} : memref<1x8x32xf32, #tpu.memory_space<vmem>>, vector<1x8x32xf32>,
    return
  }
  func.func @transform_0(%arg0: i32) -> (i32, i32, i32) {
    %c0_i32 = arith.constant 0 : i32
    %c0_i32_0 = arith.constant 0 : i32
    %c0_i32_1 = arith.constant 0 : i32
    return %arg0, %c0_i32, %c0_i32_0 : i32, i32, i32
  }
  func.func @transform_1(%arg0: i32) -> (i32, i32) {
    %c0_i32 = arith.constant 0 : i32
    %c0_i32_0 = arith.constant 0 : i32
    %c0_i32_1 = arith.constant 0 : i32
    return %c0_i32, %c0_i32_0 : i32, i32
  }
  func.func @transform_2(%arg0: i32) -> (i32, i32) {
    %c0_i32 = arith.constant 0 : i32
    %c0_i32_0 = arith.constant 0 : i32
    %c0_i32_1 = arith.constant 0 : i32
    return %c0_i32, %c0_i32_0 : i32, i32
  }
  func.func @transform_3(%arg0: i32) -> (i32, i32, i32) {
    %c0_i32 = arith.constant 0 : i32
    %c0_i32_0 = arith.constant 0 : i32
    %c0_i32_1 = arith.constant 0 : i32
    return %arg0, %c0_i32, %c0_i32_0 : i32, i32, i32
  }
}

</mosaic_0001>

<llo_original>
// kernel: tpu_custom_call.1
$region0: #{tpu_custom_call.1}
  #allocation0 [shape = 'u32[]', space=smem, size = 0x4, offset = 0x4, fixed_abs, tag = 'smem constant byte address 0x4 - core index']
  #allocation1 [shape = 'u32[144,128]{1,0:T(1,128)}', space=vmem, size = 0x12000, scoped, tag = 'internal scratch']
  %s0 = inlined_call_operand.hbm [shape: bf16[2,8,32], index: 0, kind: input, shape index: {}]
  %s1 = inlined_call_operand.hbm [shape: bf16[32,384], index: 1, kind: input, shape index: {}]
  %s2 = inlined_call_operand.vmem [shape: f32[1,384], index: 2, kind: input, shape index: {}]
  %s3 = inlined_call_operand.hbm [shape: f32[2,8,32], index: 3, kind: output, shape index: {}]
  %s4 = sld [smem:[#allocation0]]
  $region53: #{tpu_custom_call.1} parent=0
    _
  %s6 = ssub.s32 1, %s4
  %s7 = scalar_select 0, %s6, %s4
  $region1: #{tpu_custom_call.1} parent=0
    #allocation2 [shape = 'u8[4096]{0}', space=vmem, size = 0x1000, scoped, tag = 'input window, operand 0']
    #allocation3 [shape = 's32[2]{0}', space=sflag, size = 0x8, scoped, tag = 'scoped memory for tpu_custom_call.1']
    #allocation4 [shape = 's32[2]{0}', space=sflag, size = 0x8, scoped, tag = 'scoped memory for tpu_custom_call.1']
    #allocation5 [shape = 'u8[24576]{0}', space=vmem, size = 0x6000, scoped, tag = 'input window, operand 1, single buffered']
    #allocation6 [shape = 's32[1]{0}', space=sflag, size = 0x4, scoped, tag = 'scoped memory for tpu_custom_call.1']
    #allocation7 [shape = 'u8[8192]{0}', space=vmem, size = 0x2000, scoped, tag = 'output window, operand 0']
    %8 = vsyncpa [#allocation3], 0
    %s9 = scalar_lea.sflag [#allocation3], 1
    %10 = vsyncpa %s9, 0
    %11 = vsyncpa [#allocation6], 0
    %12 = vsyncpa [#allocation4], 0
    %s13 = scalar_lea.sflag [#allocation4], 1
    %14 = vsyncpa %s13, 0
    loop: start=0, step=1, limit=4
    $region2: #{tpu_custom_call.1} parent=1 // loop_pre_header
      _
    $region3: #{tpu_custom_call.1} parent=1 // loop_header
      %s16 = sphi 0, %s20
      %p17 = scmp.ge.s32.totalorder %s16, 4
      %s26 = sphi 0, %s28
      %s29 = sphi 0, %s26
      %s30 = sphi 0, %s29
      %s46 = sphi 0, %s30
      %s50 = sphi 0, %s50
      %s52 = sphi 0, %s50
      %s53 = sphi 0, %s52
      %s67 = sphi 0, %s53
      %s71 = sphi 0, %s71
      %s73 = sphi 0, %s71
      %s74 = sphi 0, %s73
      %s88 = sphi 0, %s74
      %s94 = sphi 0, %s96
      %s97 = sphi 0, %s94
      %s98 = sphi 0, %s97
      %s114 = sphi 0, %s98
    $region4: #{tpu_custom_call.1} parent=1 // loop_header_branch
      %19 = sbr.rel (%p17) target = $region8
    $region5: #{tpu_custom_call.1} parent=1 // loop_body
      %s21 = ssub.s32 %s16, 1
      %s22 = ssub.s32 %s16, 2
      %s23 = sadd.s32 %s16, 1
      %s24 = ssub.s32 %s16, %s23
      %p25 = scmp.eq.s32.totalorder %s24, 0
      %s27 = sadd.s32 %s26, 1
      %s28 = scalar_select %p25, %s26, %s27
      %p31 = pneg %p25
      %p32 = scmp.eq.s32.totalorder %s16, 1
      %p33 = por %p31, %p32
      %p34 = scmp.ne.s32.totalorder %s26, %s29
      %p35 = scmp.eq.s32.totalorder %s16, 0
      %p36 = por %p34, %p35
      %p37 = scmp.ne.s32.totalorder %s26, %s29
      %p38 = scmp.eq.s32.totalorder %s21, 1
      %p39 = por %p37, %p38
      %p40 = scmp.ne.s32.totalorder %s29, %s30
      %p41 = scmp.eq.s32.totalorder %s21, 0
      %p42 = por %p40, %p41
      %p43 = scmp.ne.s32.totalorder %s29, %s30
      %p44 = scmp.eq.s32.totalorder %s22, 1
      %p45 = por %p43, %p44
      %p47 = scmp.ne.s32.totalorder %s30, %s46
      %p48 = scmp.eq.s32.totalorder %s22, 0
      %p49 = por %p47, %p48
      %s51 = sadd.s32 %s50, 1
      %p54 = scmp.eq.s32.totalorder %s16, 1
      %p55 = scmp.ne.s32.totalorder %s50, %s52
      %p56 = scmp.eq.s32.totalorder %s16, 0
      %p57 = por %p55, %p56
      %p58 = scmp.ne.s32.totalorder %s50, %s52
      %p59 = scmp.eq.s32.totalorder %s21, 1
      %p60 = por %p58, %p59
      %p61 = scmp.ne.s32.totalorder %s52, %s53
      %p62 = scmp.eq.s32.totalorder %s21, 0
      %p63 = por %p61, %p62
      %p64 = scmp.ne.s32.totalorder %s52, %s53
      %p65 = scmp.eq.s32.totalorder %s22, 1
      %p66 = por %p64, %p65
      %p68 = scmp.ne.s32.totalorder %s53, %s67
      %p69 = scmp.eq.s32.totalorder %s22, 0
      %p70 = por %p68, %p69
      %s72 = sadd.s32 %s71, 1
      %p75 = scmp.eq.s32.totalorder %s16, 1
      %p76 = scmp.ne.s32.totalorder %s71, %s73
      %p77 = scmp.eq.s32.totalorder %s16, 0
      %p78 = por %p76, %p77
      %p79 = scmp.ne.s32.totalorder %s71, %s73
      %p80 = scmp.eq.s32.totalorder %s21, 1
      %p81 = por %p79, %p80
      %p82 = scmp.ne.s32.totalorder %s73, %s74
      %p83 = scmp.eq.s32.totalorder %s21, 0
      %p84 = por %p82, %p83
      %p85 = scmp.ne.s32.totalorder %s73, %s74
      %p86 = scmp.eq.s32.totalorder %s22, 1
      %p87 = por %p85, %p86
      %p89 = scmp.ne.s32.totalorder %s74, %s88
      %p90 = scmp.eq.s32.totalorder %s22, 0
      %p91 = por %p89, %p90
      %s92 = ssub.s32 %s16, %s23
      %p93 = scmp.eq.s32.totalorder %s92, 0
      %s95 = sadd.s32 %s94, 1
      %s96 = scalar_select %p93, %s94, %s95
      %p99 = pneg %p93
      %p100 = scmp.eq.s32.totalorder %s16, 1
      %p101 = por %p99, %p100
      %p102 = scmp.ne.s32.totalorder %s94, %s97
      %p103 = scmp.eq.s32.totalorder %s16, 0
      %p104 = por %p102, %p103
      %p105 = scmp.ne.s32.totalorder %s94, %s97
      %p106 = scmp.eq.s32.totalorder %s21, 1
      %p107 = por %p105, %p106
      %p108 = scmp.ne.s32.totalorder %s97, %s98
      %p109 = scmp.eq.s32.totalorder %s21, 0
      %p110 = por %p108, %p109
      %p111 = scmp.ne.s32.totalorder %s97, %s98
      %p112 = scmp.eq.s32.totalorder %s22, 1
      %p113 = por %p111, %p112
      %p115 = scmp.ne.s32.totalorder %s98, %s114
      %p116 = scmp.eq.s32.totalorder %s22, 0
      %p117 = por %p115, %p116
      %p118 = scmp.le.s32.totalorder 1, %s16
      %p119 = scmp.lt.s32.totalorder %s16, 3
      %p120 = pnand %p118, %p119
      %p121 = pneg %p120
      // Predicated region
      $region9: #{tpu_custom_call.1} parent=5 // pred_check
        _
      $region10: #{tpu_custom_call.1} parent=5 // pred_check_branch
        %123 = sbr.rel (%p120) target = $region12
      $region11: #{tpu_custom_call.1} parent=5 // pred_region
        %s124 = ssub.s32 %s16, 1
        // Predicated region
        $region13: #{tpu_custom_call.1} parent=11 // pred_check
          %p125 = pneg %p63
        $region14: #{tpu_custom_call.1} parent=11 // pred_check_branch
          %127 = sbr.rel (%p125) target = $region16
        $region15: #{tpu_custom_call.1} parent=11 // pred_region
          %s129 = ssub.s32 768, 768
          %130 = vsyncadd [#allocation6], %s129
          %s131 = sshll.u32 [#allocation5], 4
          %s132 = int_to_ptr.vmem [resolvable:$true] %s131
          %137 = dma.hbm_to_vmem [thread:$0]  %s1, 768, %s132, [#allocation6], 192, 192, 12
        $region16: #{tpu_custom_call.1} parent=11 // pred_fallthru
          _
        // Predicated region
        $region17: #{tpu_custom_call.1} parent=11 // pred_check
          %p138 = pneg %p84
        $region18: #{tpu_custom_call.1} parent=11 // pred_check_branch
          %140 = sbr.rel (%p138) target = $region20
        $region19: #{tpu_custom_call.1} parent=11 // pred_region
          _
        $region20: #{tpu_custom_call.1} parent=11 // pred_fallthru
          _
      $region12: #{tpu_custom_call.1} parent=5 // pred_fallthru
        _
      %p141 = scmp.lt.s32.totalorder %s16, 2
      // Predicated region
      $region21: #{tpu_custom_call.1} parent=5 // pred_check
        %p142 = pneg %p141
      $region22: #{tpu_custom_call.1} parent=5 // pred_check_branch
        %144 = sbr.rel (%p142) target = $region24
      $region23: #{tpu_custom_call.1} parent=5 // pred_region
        // Predicated region
        $region25: #{tpu_custom_call.1} parent=23 // pred_check
          %p145 = pneg %p36
        $region26: #{tpu_custom_call.1} parent=23 // pred_check_branch
          %147 = sbr.rel (%p145) target = $region28
        $region27: #{tpu_custom_call.1} parent=23 // pred_region
          %s148 = sand.u32 %s26, 1
          %s149 = scalar_lea.sflag [#allocation3], %s148
          %s150 = sand.u32 %s26, 1
          %s151 = smul.addr %s150, 4
          %s152 = scalar_lea.vmem [#allocation2], %s151
          %s154 = ssub.s32 64, 64
          %155 = vsyncadd %s149, %s154
          %s156 = smul.addr %s16, 64
          %s157 = scalar_lea.hbm %s0, %s156
          %s159 = sshll.u32 %s152, 4
          %s160 = int_to_ptr.vmem [resolvable:$true] %s159
          %162 = dma.hbm_to_vmem [thread:$0]  %s157, 64, %s160, %s149
        $region28: #{tpu_custom_call.1} parent=23 // pred_fallthru
          _
      $region24: #{tpu_custom_call.1} parent=5 // pred_fallthru
        _
      %p163 = scmp.le.s32.totalorder 1, %s16
      %p164 = scmp.lt.s32.totalorder %s16, 3
      %p165 = pnand %p163, %p164
      %p166 = pneg %p165
      // Predicated region
      $region29: #{tpu_custom_call.1} parent=5 // pred_check
        _
      $region30: #{tpu_custom_call.1} parent=5 // pred_check_branch
        %168 = sbr.rel (%p165) target = $region32
      $region31: #{tpu_custom_call.1} parent=5 // pred_region
        %s169 = ssub.s32 %s16, 1
        %s170 = sand.u32 %s29, 1
        %s171 = scalar_lea.sflag [#allocation3], %s170
        %s172 = sand.u32 %s29, 1
        %s173 = smul.addr %s172, 4
        %s174 = scalar_lea.vmem [#allocation2], %s173
        // Predicated region
        $region33: #{tpu_custom_call.1} parent=31 // pred_check
          %p175 = pneg %p42
        $region34: #{tpu_custom_call.1} parent=31 // pred_check_branch
          %177 = sbr.rel (%p175) target = $region36
        $region35: #{tpu_custom_call.1} parent=31 // pred_region
          %178 = dma.done %s171, 64
        $region36: #{tpu_custom_call.1} parent=31 // pred_fallthru
          _
        // Predicated region
        $region37: #{tpu_custom_call.1} parent=31 // pred_check
          %p179 = pneg %p63
        $region38: #{tpu_custom_call.1} parent=31 // pred_check_branch
          %181 = sbr.rel (%p179) target = $region40
        $region39: #{tpu_custom_call.1} parent=31 // pred_region
          %182 = dma.done [#allocation6], 768
        $region40: #{tpu_custom_call.1} parent=31 // pred_fallthru
          _
        %s183 = sand.u32 %s29, 1
        %s184 = scalar_lea.sflag [#allocation3], %s183
        %s185 = sand.u32 %s29, 1
        %s186 = smul.addr %s185, 4
        %s187 = scalar_lea.vmem [#allocation2], %s186
        %p188 = pneg %p42
        %p189 = pneg %p39
        %p190 = pneg %p63
        %p191 = pneg %p60
        %p192 = pneg %p84
        %p193 = pneg %p81
        %p194 = pneg %p110
        %p195 = pneg %p107
        %s196 = sand.u32 %s97, 1
        %s197 = scalar_lea.sflag [#allocation4], %s196
        %s198 = sand.u32 %s97, 1
        %s199 = smul.addr %s198, 8
        %s200 = scalar_lea.vmem [#allocation7], %s199
        %v202 = vld [vmem:[%s174] sm:$0xf]
        %v203 = vld [vmem:[#allocation5] sm:$0xff]
        %v204 = vld [vmem:[#allocation5 + $0x8] sm:$0xf]
        %v205 = vld [vmem:[#allocation5 + $0xc] sm:$0xff]
        %v206 = vld [vmem:[#allocation5 + $0x14] sm:$0xf]
        %v207 = vld [vmem:[#allocation5 + $0x18] sm:$0xff]
        %v208 = vld [vmem:[#allocation5 + $0x20] sm:$0xf]
        %v209 = vld [vmem:[#allocation5 + $0x24] sm:$0xff]
        %v210 = vld [vmem:[#allocation5 + $0x2c] sm:$0xf]
        %v211 = vld [vmem:[%s2] sm:$0x7]
        %v213 = vlaneseq
        %v214 = vshrl.u32 %v213, 7
        %v215 = vsub.s32 0, %v214
        %v216 = vrot.slane %v211, %v215
        %v217 = vlaneseq
        %v218 = vshrl.u32 %v217, 7
        %v219 = vsub.s32 1, %v218
        %v220 = vrot.slane %v211, %v219
        %v221 = vlaneseq
        %v222 = vshrl.u32 %v221, 7
        %v223 = vsub.s32 2, %v222
        %v224 = vrot.slane %v211, %v223
        %v236 = vunpack.c.l.b16 %v203
        %v237 = vunpack.c.h.b16 %v203
        %v238 = vunpack.c.l.b16 %v204
        %v239 = vunpack.c.l.b16 %v205
        %v240 = vunpack.c.h.b16 %v205
        %v241 = vunpack.c.l.b16 %v206
        %v242 = vunpack.c.l.b16 %v207
        %v243 = vunpack.c.h.b16 %v207
        %v244 = vunpack.c.l.b16 %v208
        %v245 = vunpack.c.l.b16 %v209
        %v246 = vunpack.c.h.b16 %v209
        %v247 = vunpack.c.l.b16 %v210
        %v248 = vpack.c.b16 %v239, %v236
        %v249 = vpack.c.b16 %v240, %v237
        %v250 = vpack.c.b16 %v241, %v238
        %v251 = vpack.c.b16 %v245, %v242
        %v252 = vpack.c.b16 %v246, %v243
        %v253 = vpack.c.b16 %v247, %v244
        %vm260 = vcmask 261120
        %v262 = vsel %vm260, %v202, 0
        %264 = vmatprep.subr.bf16.mxu0 %v249
        %265 = vmatpush1.bf16.msra.mxu0 %v248
        %266 = vmatprep.subr.bf16.mxu0 %v252
        %267 = vmatpush1.bf16.msra.mxu0 %v251
        %268 = vmatprep.subr.bf16.mxu0 0
        %269 = vmatpush1.bf16.msra.mxu0 0
        %270 = vmatprep.subr.bf16.mxu0 0
        %271 = vmatpush1.bf16.msra.mxu0 0
        %272 = vmatprep.subr.bf16.mxu0 0
        %273 = vmatpush1.bf16.msra.mxu0 0
        %274 = vmatprep.subr.bf16.mxu0 0
        %275 = vmatpush1.bf16.msra.mxu0 0
        %276 = vmatprep.subr.bf16.mxu0 0
        %277 = vmatpush1.bf16.msra.mxu0 0
        %278 = vmatprep.subr.bf16.mxu0 0
        %279 = vmatpush1.bf16.msra.mxu0 0
        %280 = vmatprep.subr.bf16.mxu0 0
        %281 = vmatpush1.bf16.msra.mxu0 0
        %282 = vmatprep.subr.bf16.mxu0 0
        %283 = vmatpush1.bf16.msra.mxu0 0
        %284 = vmatprep.subr.bf16.mxu0 0
        %285 = vmatpush1.bf16.msra.mxu0 0
        %286 = vmatprep.subr.bf16.mxu0 0
        %287 = vmatpush1.bf16.msra.mxu0 0
        %288 = vmatprep.subr.bf16.mxu0 0
        %289 = vmatpush1.bf16.msra.mxu0 0
        %290 = vmatprep.subr.bf16.mxu0 0
        %291 = vmatpush1.bf16.msra.mxu0 0
        %292 = vmatprep.subr.bf16.mxu0 0
        %293 = vmatpush1.bf16.msra.mxu0 0
        %294 = vmatprep.subr.bf16.mxu0 0
        %295 = vmatpush1.bf16.msra.mxu0 0
        %296 = vmatprep.mubr.bf16.mxu0 0
        %297 = vmatmul.mubr.bf16.gmra.mrb[0].mxu0 %v262
        %v298 = vpop.f32.mrb[0].mxu0
        %v299 = vadd.f32 %v216, %v298
        %v300 = vpop.f32.mrb[0].mxu0
        %v301 = vadd.f32 %v220, %v300
        %v302 = vpop.f32.mrb[0].mxu0
        %v303 = vpop.f32.mrb[0].mxu0
        %304 = vdwg.mxu0
        %305 = vmatprep.subr.bf16.mxu0 0
        %306 = vmatpush1.bf16.msra.mxu0 %v250
        %307 = vmatprep.subr.bf16.mxu0 0
        %308 = vmatpush1.bf16.msra.mxu0 %v253
        %309 = vmatprep.subr.bf16.mxu0 0
        %310 = vmatpush1.bf16.msra.mxu0 0
        %311 = vmatprep.subr.bf16.mxu0 0
        %312 = vmatpush1.bf16.msra.mxu0 0
        %313 = vmatprep.subr.bf16.mxu0 0
        %314 = vmatpush1.bf16.msra.mxu0 0
        %315 = vmatprep.subr.bf16.mxu0 0
        %316 = vmatpush1.bf16.msra.mxu0 0
        %317 = vmatprep.subr.bf16.mxu0 0
        %318 = vmatpush1.bf16.msra.mxu0 0
        %319 = vmatprep.subr.bf16.mxu0 0
        %320 = vmatpush1.bf16.msra.mxu0 0
        %321 = vmatprep.subr.bf16.mxu0 0
        %322 = vmatpush1.bf16.msra.mxu0 0
        %323 = vmatprep.subr.bf16.mxu0 0
        %324 = vmatpush1.bf16.msra.mxu0 0
        %325 = vmatprep.subr.bf16.mxu0 0
        %326 = vmatpush1.bf16.msra.mxu0 0
        %327 = vmatprep.subr.bf16.mxu0 0
        %328 = vmatpush1.bf16.msra.mxu0 0
        %329 = vmatprep.subr.bf16.mxu0 0
        %330 = vmatpush1.bf16.msra.mxu0 0
        %331 = vmatprep.subr.bf16.mxu0 0
        %332 = vmatpush1.bf16.msra.mxu0 0
        %333 = vmatprep.subr.bf16.mxu0 0
        %334 = vmatpush1.bf16.msra.mxu0 0
        %335 = vmatprep.subr.bf16.mxu0 0
        %336 = vmatpush1.bf16.msra.mxu0 0
        %337 = vmatprep.mubr.bf16.mxu0 0
        %338 = vmatmul.mubr.bf16.gmra.mrb[0].mxu0 %v262
        %v339 = vpop.f32.mrb[0].mxu0
        %v340 = vadd.f32 %v224, %v339
        %v341 = vpop.f32.mrb[0].mxu0
        %v342 = vpop.f32.mrb[0].mxu0
        %v343 = vpop.f32.mrb[0].mxu0
        %344 = vdwg.mxu0
        %v345 = vpack.c.bf16 %v299, %v299
        %v346 = vpack.c.bf16 %v301, %v301
        %347 = vmatprep.subr.bf16.mxu0 0
        %348 = vmatpush1.bf16.xpose.msra.mxu0 %v346
        %349 = vmatprep.subr.bf16.mxu0 0
        %350 = vmatpush1.bf16.xpose.msra.mxu0 0
        %351 = vmatprep.subr.bf16.mxu0 0
        %352 = vmatpush1.bf16.xpose.msra.mxu0 0
        %353 = vmatprep.subr.bf16.mxu0 0
        %354 = vmatpush1.bf16.xpose.msra.mxu0 0
        %355 = vmatprep.subr.bf16.mxu0 0
        %356 = vmatpush1.bf16.xpose.msra.mxu0 0
        %357 = vmatprep.subr.bf16.mxu0 0
        %358 = vmatpush1.bf16.xpose.msra.mxu0 0
        %359 = vmatprep.subr.bf16.mxu0 0
        %360 = vmatpush1.bf16.xpose.msra.mxu0 0
        %361 = vmatprep.subr.bf16.mxu0 0
        %362 = vmatpush1.bf16.xpose.msra.mxu0 0
        %363 = vmatprep.subr.bf16.mxu0 0
        %364 = vmatpush1.bf16.xpose.msra.mxu0 0
        %365 = vmatprep.subr.bf16.mxu0 0
        %366 = vmatpush1.bf16.xpose.msra.mxu0 0
        %367 = vmatprep.subr.bf16.mxu0 0
        %368 = vmatpush1.bf16.xpose.msra.mxu0 0
        %369 = vmatprep.subr.bf16.mxu0 0
        %370 = vmatpush1.bf16.xpose.msra.mxu0 0
        %371 = vmatprep.subr.bf16.mxu0 0
        %372 = vmatpush1.bf16.xpose.msra.mxu0 0
        %373 = vmatprep.subr.bf16.mxu0 0
        %374 = vmatpush1.bf16.xpose.msra.mxu0 0
        %375 = vmatprep.subr.bf16.mxu0 0
        %376 = vmatpush1.bf16.xpose.msra.mxu0 0
        %377 = vmatprep.subr.bf16.mxu0 0
        %378 = vmatpush1.bf16.xpose.msra.mxu0 0
        %379 = vmatprep.mubr.bf16.mxu0 0
        %380 = vmatmul.mubr.bf16.gmra.mrb[0].mxu0 %v345
        %v381 = vpop.f32.mrb[0].mxu0
        %v382 = vadd.f32 0.0, %v381
        %v383 = vpop.f32.mrb[0].mxu0
        %v384 = vpop.f32.mrb[0].mxu0
        %v385 = vpop.f32.mrb[0].mxu0
        %386 = vdwg.mxu0
        %vm387 = vcmask 64512
        %v388 = vsel %vm387, %v382, -inf
        %389 = vmax.xlane.f32.xlu0 %v388
        %v390 = vpop.xlane.xlu0 %389
        %v391 = vsub.f32 %v382, %v390
        %v392 = vmul.f32 %v391, 1.442695
        %v393 = vpow.pop %v392
        %v394 = vsel %vm387, %v393, 0.0
        %395 = vadd.xlane.f32.xlu0 %v394
        %v396 = vpop.xlane.xlu0 %395
        %v397 = vpack.c.bf16 %v393, %v393
        %v398 = vpack.c.bf16 %v340, %v340
        %v400 = vsel %vm387, %v397, 0
        %vm402 = vcmask 1043456
        %v404 = vsel %vm402, %v398, 0
        %406 = vmatprep.subr.bf16.mxu0 0
        %407 = vmatpush1.bf16.msra.mxu0 %v404
        %408 = vmatprep.subr.bf16.mxu0 0
        %409 = vmatpush1.bf16.msra.mxu0 0
        %410 = vmatprep.subr.bf16.mxu0 0
        %411 = vmatpush1.bf16.msra.mxu0 0
        %412 = vmatprep.subr.bf16.mxu0 0
        %413 = vmatpush1.bf16.msra.mxu0 0
        %414 = vmatprep.subr.bf16.mxu0 0
        %415 = vmatpush1.bf16.msra.mxu0 0
        %416 = vmatprep.subr.bf16.mxu0 0
        %417 = vmatpush1.bf16.msra.mxu0 0
        %418 = vmatprep.subr.bf16.mxu0 0
        %419 = vmatpush1.bf16.msra.mxu0 0
        %420 = vmatprep.subr.bf16.mxu0 0
        %421 = vmatpush1.bf16.msra.mxu0 0
        %422 = vmatprep.subr.bf16.mxu0 0
        %423 = vmatpush1.bf16.msra.mxu0 0
        %424 = vmatprep.subr.bf16.mxu0 0
        %425 = vmatpush1.bf16.msra.mxu0 0
        %426 = vmatprep.subr.bf16.mxu0 0
        %427 = vmatpush1.bf16.msra.mxu0 0
        %428 = vmatprep.subr.bf16.mxu0 0
        %429 = vmatpush1.bf16.msra.mxu0 0
        %430 = vmatprep.subr.bf16.mxu0 0
        %431 = vmatpush1.bf16.msra.mxu0 0
        %432 = vmatprep.subr.bf16.mxu0 0
        %433 = vmatpush1.bf16.msra.mxu0 0
        %434 = vmatprep.subr.bf16.mxu0 0
        %435 = vmatpush1.bf16.msra.mxu0 0
        %436 = vmatprep.subr.bf16.mxu0 0
        %437 = vmatpush1.bf16.msra.mxu0 0
        %438 = vmatprep.mubr.bf16.mxu0 0
        %439 = vmatmul.mubr.bf16.gmra.mrb[0].mxu0 %v400
        %v440 = vpop.f32.mrb[0].mxu0
        %v441 = vadd.f32 0.0, %v440
        %v442 = vpop.f32.mrb[0].mxu0
        %v443 = vpop.f32.mrb[0].mxu0
        %v444 = vpop.f32.mrb[0].mxu0
        %445 = vdwg.mxu0
        %v446 = vrcp.pop %v396
        %v447 = vmul.f32 %v441, %v446
        %448 = vst.msk [vmem:[%s200] sm:$0xff] %vm260, %v447
        %s449 = sand.u32 %s97, 1
        %s450 = scalar_lea.sflag [#allocation4], %s449
        %s451 = sand.u32 %s97, 1
        %s452 = smul.addr %s451, 8
        %s453 = scalar_lea.vmem [#allocation7], %s452
        // Predicated region
        $region41: #{tpu_custom_call.1} parent=31 // pred_check
          %p454 = pneg %p107
        $region42: #{tpu_custom_call.1} parent=31 // pred_check_branch
          %456 = sbr.rel (%p454) target = $region44
        $region43: #{tpu_custom_call.1} parent=31 // pred_region
          %s458 = ssub.s32 128, 128
          %459 = vsyncadd %s450, %s458
          %s460 = smul.addr %s21, 128
          %s461 = scalar_lea.hbm %s3, %s460
          %s463 = sshll.u32 %s453, 4
          %s464 = int_to_ptr.vmem [resolvable:$true] %s463
          %466 = dma.vmem_to_hbm [thread:$0]  %s464, 128, %s461, %s450
        $region44: #{tpu_custom_call.1} parent=31 // pred_fallthru
          _
      $region32: #{tpu_custom_call.1} parent=5 // pred_fallthru
        _
      %p467 = scmp.le.s32.totalorder 2, %s16
      // Predicated region
      $region45: #{tpu_custom_call.1} parent=5 // pred_check
        %p468 = pneg %p467
      $region46: #{tpu_custom_call.1} parent=5 // pred_check_branch
        %470 = sbr.rel (%p468) target = $region48
      $region47: #{tpu_custom_call.1} parent=5 // pred_region
        %s471 = ssub.s32 %s16, 2
        // Predicated region
        $region49: #{tpu_custom_call.1} parent=47 // pred_check
          %p472 = pneg %p113
        $region50: #{tpu_custom_call.1} parent=47 // pred_check_branch
          %474 = sbr.rel (%p472) target = $region52
        $region51: #{tpu_custom_call.1} parent=47 // pred_region
          %s475 = sand.u32 %s98, 1
          %s476 = scalar_lea.sflag [#allocation4], %s475
          %s477 = sand.u32 %s98, 1
          %s478 = smul.addr %s477, 8
          %s479 = scalar_lea.vmem [#allocation7], %s478
          %480 = dma.done %s476, 128
        $region52: #{tpu_custom_call.1} parent=47 // pred_fallthru
          _
      $region48: #{tpu_custom_call.1} parent=5 // pred_fallthru
        _
    $region6: #{tpu_custom_call.1} parent=1 // loop_footer
      %s20 = sadd.s32 1, %s16
    $region7: #{tpu_custom_call.1} parent=1 // loop_footer_branch
      %15 = sbr.rel target = $region3
    $region8: #{tpu_custom_call.1} parent=1 // loop_exit
      _
    %481 = vsyncpa [#allocation3], 1
    %s482 = scalar_lea.sflag [#allocation3], 1
    %483 = vsyncpa %s482, 1
    %484 = vsyncpa [#allocation6], 1
    %485 = vsyncpa [#allocation4], 1
    %s486 = scalar_lea.sflag [#allocation4], 1
    %487 = vsyncpa %s486, 1

// kernel: tpu_custom_call.1
$region0: #{tpu_custom_call.1}
  #allocation0 [shape = 'u32[]', space=smem, size = 0x4, offset = 0x4, fixed_abs, tag = 'smem constant byte address 0x4 - core index']
  #allocation1 [shape = 'u32[144,128]{1,0:T(1,128)}', space=vmem, size = 0x12000, scoped, tag = 'internal scratch']
  %s0 = inlined_call_operand.hbm [shape: bf16[2,8,32], index: 0, kind: input, shape index: {}]
  %s1 = inlined_call_operand.hbm [shape: bf16[32,384], index: 1, kind: input, shape index: {}]
  %s2 = inlined_call_operand.vmem [shape: f32[1,384], index: 2, kind: input, shape index: {}]
  %s3 = inlined_call_operand.hbm [shape: f32[2,8,32], index: 3, kind: output, shape index: {}]
  %s4 = sld [smem:[#allocation0]]
  $region53: #{tpu_custom_call.1} parent=0
    _
  %s6 = ssub.s32 1, %s4
  %s7 = scalar_select 0, %s6, %s4
  $region1: #{tpu_custom_call.1} parent=0
    #allocation2 [shape = 'u8[4096]{0}', space=vmem, size = 0x1000, scoped, tag = 'input window, operand 0']
    #allocation3 [shape = 's32[2]{0}', space=sflag, size = 0x8, scoped, tag = 'scoped memory for tpu_custom_call.1']
    #allocation4 [shape = 's32[2]{0}', space=sflag, size = 0x8, scoped, tag = 'scoped memory for tpu_custom_call.1']
    #allocation5 [shape = 'u8[24576]{0}', space=vmem, size = 0x6000, scoped, tag = 'input window, operand 1, single buffered']
    #allocation6 [shape = 's32[1]{0}', space=sflag, size = 0x4, scoped, tag = 'scoped memory for tpu_custom_call.1']
    #allocation7 [shape = 'u8[8192]{0}', space=vmem, size = 0x2000, scoped, tag = 'output window, operand 0']
    %8 = vsyncpa [#allocation3], 0
    %s9 = scalar_lea.sflag [#allocation3], 1
    %10 = vsyncpa %s9, 0
    %11 = vsyncpa [#allocation6], 0
    %12 = vsyncpa [#allocation4], 0
    %s13 = scalar_lea.sflag [#allocation4], 1
    %14 = vsyncpa %s13, 0
    loop: start=0, step=1, limit=4
    $region2: #{tpu_custom_call.1} parent=1 // loop_pre_header
      _
    $region3: #{tpu_custom_call.1} parent=1 // loop_header
      %s16 = sphi 0, %s20
      %p17 = scmp.ge.s32.totalorder %s16, 4
      %s26 = sphi 0, %s28
      %s29 = sphi 0, %s26
      %s30 = sphi 0, %s29
      %s46 = sphi 0, %s30
      %s50 = sphi 0, %s50
      %s52 = sphi 0, %s50
      %s53 = sphi 0, %s52
      %s67 = sphi 0, %s53
      %s71 = sphi 0, %s71
      %s73 = sphi 0, %s71
      %s74 = sphi 0, %s73
      %s88 = sphi 0, %s74
      %s94 = sphi 0, %s96
      %s97 = sphi 0, %s94
      %s98 = sphi 0, %s97
      %s114 = sphi 0, %s98
    $region4: #{tpu_custom_call.1} parent=1 // loop_header_branch
      %19 = sbr.rel (%p17) target = $region8
    $region5: #{tpu_custom_call.1} parent=1 // loop_body
      %s21 = ssub.s32 %s16, 1
      %s22 = ssub.s32 %s16, 2
      %s23 = sadd.s32 %s16, 1
      %s24 = ssub.s32 %s16, %s23
      %p25 = scmp.eq.s32.totalorder %s24, 0
      %s27 = sadd.s32 %s26, 1
      %s28 = scalar_select %p25, %s26, %s27
      %p31 = pneg %p25
      %p32 = scmp.eq.s32.totalorder %s16, 1
      %p33 = por %p31, %p32
      %p34 = scmp.ne.s32.totalorder %s26, %s29
      %p35 = scmp.eq.s32.totalorder %s16, 0
      %p36 = por %p34, %p35
      %p37 = scmp.ne.s32.totalorder %s26, %s29
      %p38 = scmp.eq.s32.totalorder %s21, 1
      %p39 = por %p37, %p38
      %p40 = scmp.ne.s32.totalorder %s29, %s30
      %p41 = scmp.eq.s32.totalorder %s21, 0
      %p42 = por %p40, %p41
      %p43 = scmp.ne.s32.totalorder %s29, %s30
      %p44 = scmp.eq.s32.totalorder %s22, 1
      %p45 = por %p43, %p44
      %p47 = scmp.ne.s32.totalorder %s30, %s46
      %p48 = scmp.eq.s32.totalorder %s22, 0
      %p49 = por %p47, %p48
      %s51 = sadd.s32 %s50, 1
      %p54 = scmp.eq.s32.totalorder %s16, 1
      %p55 = scmp.ne.s32.totalorder %s50, %s52
      %p56 = scmp.eq.s32.totalorder %s16, 0
      %p57 = por %p55, %p56
      %p58 = scmp.ne.s32.totalorder %s50, %s52
      %p59 = scmp.eq.s32.totalorder %s21, 1
      %p60 = por %p58, %p59
      %p61 = scmp.ne.s32.totalorder %s52, %s53
      %p62 = scmp.eq.s32.totalorder %s21, 0
      %p63 = por %p61, %p62
      %p64 = scmp.ne.s32.totalorder %s52, %s53
      %p65 = scmp.eq.s32.totalorder %s22, 1
      %p66 = por %p64, %p65
      %p68 = scmp.ne.s32.totalorder %s53, %s67
      %p69 = scmp.eq.s32.totalorder %s22, 0
      %p70 = por %p68, %p69
      %s72 = sadd.s32 %s71, 1
      %p75 = scmp.eq.s32.totalorder %s16, 1
      %p76 = scmp.ne.s32.totalorder %s71, %s73
      %p77 = scmp.eq.s32.totalorder %s16, 0
      %p78 = por %p76, %p77
      %p79 = scmp.ne.s32.totalorder %s71, %s73
      %p80 = scmp.eq.s32.totalorder %s21, 1
      %p81 = por %p79, %p80
      %p82 = scmp.ne.s32.totalorder %s73, %s74
      %p83 = scmp.eq.s32.totalorder %s21, 0
      %p84 = por %p82, %p83
      %p85 = scmp.ne.s32.totalorder %s73, %s74
      %p86 = scmp.eq.s32.totalorder %s22, 1
      %p87 = por %p85, %p86
      %p89 = scmp.ne.s32.totalorder %s74, %s88
      %p90 = scmp.eq.s32.totalorder %s22, 0
      %p91 = por %p89, %p90
      %s92 = ssub.s32 %s16, %s23
      %p93 = scmp.eq.s32.totalorder %s92, 0
      %s95 = sadd.s32 %s94, 1
      %s96 = scalar_select %p93, %s94, %s95
      %p99 = pneg %p93
      %p100 = scmp.eq.s32.totalorder %s16, 1
      %p101 = por %p99, %p100
      %p102 = scmp.ne.s32.totalorder %s94, %s97
      %p103 = scmp.eq.s32.totalorder %s16, 0
      %p104 = por %p102, %p103
      %p105 = scmp.ne.s32.totalorder %s94, %s97
      %p106 = scmp.eq.s32.totalorder %s21, 1
      %p107 = por %p105, %p106
      %p108 = scmp.ne.s32.totalorder %s97, %s98
      %p109 = scmp.eq.s32.totalorder %s21, 0
      %p110 = por %p108, %p109
      %p111 = scmp.ne.s32.totalorder %s97, %s98
      %p112 = scmp.eq.s32.totalorder %s22, 1
      %p113 = por %p111, %p112
      %p115 = scmp.ne.s32.totalorder %s98, %s114
      %p116 = scmp.eq.s32.totalorder %s22, 0
      %p117 = por %p115, %p116
      %p118 = scmp.le.s32.totalorder 1, %s16
      %p119 = scmp.lt.s32.totalorder %s16, 3
      %p120 = pnand %p118, %p119
      %p121 = pneg %p120
      // Predicated region
      $region9: #{tpu_custom_call.1} parent=5 // pred_check
        _
      $region10: #{tpu_custom_call.1} parent=5 // pred_check_branch
        %123 = sbr.rel (%p120) target = $region12
      $region11: #{tpu_custom_call.1} parent=5 // pred_region
        %s124 = ssub.s32 %s16, 1
        // Predicated region
        $region13: #{tpu_custom_call.1} parent=11 // pred_check
          %p125 = pneg %p63
        $region14: #{tpu_custom_call.1} parent=11 // pred_check_branch
          %127 = sbr.rel (%p125) target = $region16
        $region15: #{tpu_custom_call.1} parent=11 // pred_region
          %s129 = ssub.s32 768, 768
          %130 = vsyncadd [#allocation6], %s129
          %s131 = sshll.u32 [#allocation5], 4
          %s132 = int_to_ptr.vmem [resolvable:$true] %s131
          %137 = dma.hbm_to_vmem [thread:$0]  %s1, 768, %s132, [#allocation6], 192, 192, 12
        $region16: #{tpu_custom_call.1} parent=11 // pred_fallthru
          _
        // Predicated region
        $region17: #{tpu_custom_call.1} parent=11 // pred_check
          %p138 = pneg %p84
        $region18: #{tpu_custom_call.1} parent=11 // pred_check_branch
          %140 = sbr.rel (%p138) target = $region20
        $region19: #{tpu_custom_call.1} parent=11 // pred_region
          _
        $region20: #{tpu_custom_call.1} parent=11 // pred_fallthru
          _
      $region12: #{tpu_custom_call.1} parent=5 // pred_fallthru
        _
      %p141 = scmp.lt.s32.totalorder %s16, 2
      // Predicated region
      $region21: #{tpu_custom_call.1} parent=5 // pred_check
        %p142 = pneg %p141
      $region22: #{tpu_custom_call.1} parent=5 // pred_check_branch
        %144 = sbr.rel (%p142) target = $region24
      $region23: #{tpu_custom_call.1} parent=5 // pred_region
        // Predicated region
        $region25: #{tpu_custom_call.1} parent=23 // pred_check
          %p145 = pneg %p36
        $region26: #{tpu_custom_call.1} parent=23 // pred_check_branch
          %147 = sbr.rel (%p145) target = $region28
        $region27: #{tpu_custom_call.1} parent=23 // pred_region
          %s148 = sand.u32 %s26, 1
          %s149 = scalar_lea.sflag [#allocation3], %s148
          %s150 = sand.u32 %s26, 1
          %s151 = smul.addr %s150, 4
          %s152 = scalar_lea.vmem [#allocation2], %s151
          %s154 = ssub.s32 64, 64
          %155 = vsyncadd %s149, %s154
          %s156 = smul.addr %s16, 64
          %s157 = scalar_lea.hbm %s0, %s156
          %s159 = sshll.u32 %s152, 4
          %s160 = int_to_ptr.vmem [resolvable:$true] %s159
          %162 = dma.hbm_to_vmem [thread:$0]  %s157, 64, %s160, %s149
        $region28: #{tpu_custom_call.1} parent=23 // pred_fallthru
          _
      $region24: #{tpu_custom_call.1} parent=5 // pred_fallthru
        _
      %p163 = scmp.le.s32.totalorder 1, %s16
      %p164 = scmp.lt.s32.totalorder %s16, 3
      %p165 = pnand %p163, %p164
      %p166 = pneg %p165
      // Predicated region
      $region29: #{tpu_custom_call.1} parent=5 // pred_check
        _
      $region30: #{tpu_custom_call.1} parent=5 // pred_check_branch
        %168 = sbr.rel (%p165) target = $region32
      $region31: #{tpu_custom_call.1} parent=5 // pred_region
        %s169 = ssub.s32 %s16, 1
        %s170 = sand.u32 %s29, 1
        %s171 = scalar_lea.sflag [#allocation3], %s170
        %s172 = sand.u32 %s29, 1
        %s173 = smul.addr %s172, 4
        %s174 = scalar_lea.vmem [#allocation2], %s173
        // Predicated region
        $region33: #{tpu_custom_call.1} parent=31 // pred_check
          %p175 = pneg %p42
        $region34: #{tpu_custom_call.1} parent=31 // pred_check_branch
          %177 = sbr.rel (%p175) target = $region36
        $region35: #{tpu_custom_call.1} parent=31 // pred_region
          %178 = dma.done %s171, 64
        $region36: #{tpu_custom_call.1} parent=31 // pred_fallthru
          _
        // Predicated region
        $region37: #{tpu_custom_call.1} parent=31 // pred_check
          %p179 = pneg %p63
        $region38: #{tpu_custom_call.1} parent=31 // pred_check_branch
          %181 = sbr.rel (%p179) target = $region40
        $region39: #{tpu_custom_call.1} parent=31 // pred_region
          %182 = dma.done [#allocation6], 768
        $region40: #{tpu_custom_call.1} parent=31 // pred_fallthru
          _
        %s183 = sand.u32 %s29, 1
        %s184 = scalar_lea.sflag [#allocation3], %s183
        %s185 = sand.u32 %s29, 1
        %s186 = smul.addr %s185, 4
        %s187 = scalar_lea.vmem [#allocation2], %s186
        %p188 = pneg %p42
        %p189 = pneg %p39
        %p190 = pneg %p63
        %p191 = pneg %p60
        %p192 = pneg %p84
        %p193 = pneg %p81
        %p194 = pneg %p110
        %p195 = pneg %p107
        %s196 = sand.u32 %s97, 1
        %s197 = scalar_lea.sflag [#allocation4], %s196
        %s198 = sand.u32 %s97, 1
        %s199 = smul.addr %s198, 8
        %s200 = scalar_lea.vmem [#allocation7], %s199
        %v202 = vld [vmem:[%s174] sm:$0xf]
        %v203 = vld [vmem:[#allocation5] sm:$0xff]
        %v204 = vld [vmem:[#allocation5 + $0x8] sm:$0xf]
        %v205 = vld [vmem:[#allocation5 + $0xc] sm:$0xff]
        %v206 = vld [vmem:[#allocation5 + $0x14] sm:$0xf]
        %v207 = vld [vmem:[#allocation5 + $0x18] sm:$0xff]
        %v208 = vld [vmem:[#allocation5 + $0x20] sm:$0xf]
        %v209 = vld [vmem:[#allocation5 + $0x24] sm:$0xff]
        %v210 = vld [vmem:[#allocation5 + $0x2c] sm:$0xf]
        %v211 = vld [vmem:[%s2] sm:$0x7]
        %v213 = vlaneseq
        %v214 = vshrl.u32 %v213, 7
        %v215 = vsub.s32 0, %v214
        %v216 = vrot.slane %v211, %v215
        %v217 = vlaneseq
        %v218 = vshrl.u32 %v217, 7
        %v219 = vsub.s32 1, %v218
        %v220 = vrot.slane %v211, %v219
        %v221 = vlaneseq
        %v222 = vshrl.u32 %v221, 7
        %v223 = vsub.s32 2, %v222
        %v224 = vrot.slane %v211, %v223
        %v236 = vunpack.c.l.b16 %v203
        %v237 = vunpack.c.h.b16 %v203
        %v238 = vunpack.c.l.b16 %v204
        %v239 = vunpack.c.l.b16 %v205
        %v240 = vunpack.c.h.b16 %v205
        %v241 = vunpack.c.l.b16 %v206
        %v242 = vunpack.c.l.b16 %v207
        %v243 = vunpack.c.h.b16 %v207
        %v244 = vunpack.c.l.b16 %v208
        %v245 = vunpack.c.l.b16 %v209
        %v246 = vunpack.c.h.b16 %v209
        %v247 = vunpack.c.l.b16 %v210
        %v248 = vpack.c.b16 %v239, %v236
        %v249 = vpack.c.b16 %v240, %v237
        %v250 = vpack.c.b16 %v241, %v238
        %v251 = vpack.c.b16 %v245, %v242
        %v252 = vpack.c.b16 %v246, %v243
        %v253 = vpack.c.b16 %v247, %v244
        %vm260 = vcmask 261120
        %v262 = vsel %vm260, %v202, 0
        %264 = vmatprep.subr.bf16.mxu0 %v249
        %265 = vmatpush1.bf16.msra.mxu0 %v248
        %266 = vmatprep.subr.bf16.mxu0 %v252
        %267 = vmatpush1.bf16.msra.mxu0 %v251
        %268 = vmatprep.subr.bf16.mxu0 0
        %269 = vmatpush1.bf16.msra.mxu0 0
        %270 = vmatprep.subr.bf16.mxu0 0
        %271 = vmatpush1.bf16.msra.mxu0 0
        %272 = vmatprep.subr.bf16.mxu0 0
        %273 = vmatpush1.bf16.msra.mxu0 0
        %274 = vmatprep.subr.bf16.mxu0 0
        %275 = vmatpush1.bf16.msra.mxu0 0
        %276 = vmatprep.subr.bf16.mxu0 0
        %277 = vmatpush1.bf16.msra.mxu0 0
        %278 = vmatprep.subr.bf16.mxu0 0
        %279 = vmatpush1.bf16.msra.mxu0 0
        %280 = vmatprep.subr.bf16.mxu0 0
        %281 = vmatpush1.bf16.msra.mxu0 0
        %282 = vmatprep.subr.bf16.mxu0 0
        %283 = vmatpush1.bf16.msra.mxu0 0
        %284 = vmatprep.subr.bf16.mxu0 0
        %285 = vmatpush1.bf16.msra.mxu0 0
        %286 = vmatprep.subr.bf16.mxu0 0
        %287 = vmatpush1.bf16.msra.mxu0 0
        %288 = vmatprep.subr.bf16.mxu0 0
        %289 = vmatpush1.bf16.msra.mxu0 0
        %290 = vmatprep.subr.bf16.mxu0 0
        %291 = vmatpush1.bf16.msra.mxu0 0
        %292 = vmatprep.subr.bf16.mxu0 0
        %293 = vmatpush1.bf16.msra.mxu0 0
        %294 = vmatprep.subr.bf16.mxu0 0
        %295 = vmatpush1.bf16.msra.mxu0 0
        %296 = vmatprep.mubr.bf16.mxu0 0
        %297 = vmatmul.mubr.bf16.gmra.mrb[0].mxu0 %v262
        %v298 = vpop.f32.mrb[0].mxu0
        %v299 = vadd.f32 %v216, %v298
        %v300 = vpop.f32.mrb[0].mxu0
        %v301 = vadd.f32 %v220, %v300
        %v302 = vpop.f32.mrb[0].mxu0
        %v303 = vpop.f32.mrb[0].mxu0
        %304 = vdwg.mxu0
        %305 = vmatprep.subr.bf16.mxu0 0
        %306 = vmatpush1.bf16.msra.mxu0 %v250
        %307 = vmatprep.subr.bf16.mxu0 0
        %308 = vmatpush1.bf16.msra.mxu0 %v253
        %309 = vmatprep.subr.bf16.mxu0 0
        %310 = vmatpush1.bf16.msra.mxu0 0
        %311 = vmatprep.subr.bf16.mxu0 0
        %312 = vmatpush1.bf16.msra.mxu0 0
        %313 = vmatprep.subr.bf16.mxu0 0
        %314 = vmatpush1.bf16.msra.mxu0 0
        %315 = vmatprep.subr.bf16.mxu0 0
        %316 = vmatpush1.bf16.msra.mxu0 0
        %317 = vmatprep.subr.bf16.mxu0 0
        %318 = vmatpush1.bf16.msra.mxu0 0
        %319 = vmatprep.subr.bf16.mxu0 0
        %320 = vmatpush1.bf16.msra.mxu0 0
        %321 = vmatprep.subr.bf16.mxu0 0
        %322 = vmatpush1.bf16.msra.mxu0 0
        %323 = vmatprep.subr.bf16.mxu0 0
        %324 = vmatpush1.bf16.msra.mxu0 0
        %325 = vmatprep.subr.bf16.mxu0 0
        %326 = vmatpush1.bf16.msra.mxu0 0
        %327 = vmatprep.subr.bf16.mxu0 0
        %328 = vmatpush1.bf16.msra.mxu0 0
        %329 = vmatprep.subr.bf16.mxu0 0
        %330 = vmatpush1.bf16.msra.mxu0 0
        %331 = vmatprep.subr.bf16.mxu0 0
        %332 = vmatpush1.bf16.msra.mxu0 0
        %333 = vmatprep.subr.bf16.mxu0 0
        %334 = vmatpush1.bf16.msra.mxu0 0
        %335 = vmatprep.subr.bf16.mxu0 0
        %336 = vmatpush1.bf16.msra.mxu0 0
        %337 = vmatprep.mubr.bf16.mxu0 0
        %338 = vmatmul.mubr.bf16.gmra.mrb[0].mxu0 %v262
        %v339 = vpop.f32.mrb[0].mxu0
        %v340 = vadd.f32 %v224, %v339
        %v341 = vpop.f32.mrb[0].mxu0
        %v342 = vpop.f32.mrb[0].mxu0
        %v343 = vpop.f32.mrb[0].mxu0
        %344 = vdwg.mxu0
        %v345 = vpack.c.bf16 %v299, %v299
        %v346 = vpack.c.bf16 %v301, %v301
        %347 = vmatprep.subr.bf16.mxu0 0
        %348 = vmatpush1.bf16.xpose.msra.mxu0 %v346
        %349 = vmatprep.subr.bf16.mxu0 0
        %350 = vmatpush1.bf16.xpose.msra.mxu0 0
        %351 = vmatprep.subr.bf16.mxu0 0
        %352 = vmatpush1.bf16.xpose.msra.mxu0 0
        %353 = vmatprep.subr.bf16.mxu0 0
        %354 = vmatpush1.bf16.xpose.msra.mxu0 0
        %355 = vmatprep.subr.bf16.mxu0 0
        %356 = vmatpush1.bf16.xpose.msra.mxu0 0
        %357 = vmatprep.subr.bf16.mxu0 0
        %358 = vmatpush1.bf16.xpose.msra.mxu0 0
        %359 = vmatprep.subr.bf16.mxu0 0
        %360 = vmatpush1.bf16.xpose.msra.mxu0 0
        %361 = vmatprep.subr.bf16.mxu0 0
        %362 = vmatpush1.bf16.xpose.msra.mxu0 0
        %363 = vmatprep.subr.bf16.mxu0 0
        %364 = vmatpush1.bf16.xpose.msra.mxu0 0
        %365 = vmatprep.subr.bf16.mxu0 0
        %366 = vmatpush1.bf16.xpose.msra.mxu0 0
        %367 = vmatprep.subr.bf16.mxu0 0
        %368 = vmatpush1.bf16.xpose.msra.mxu0 0
        %369 = vmatprep.subr.bf16.mxu0 0
        %370 = vmatpush1.bf16.xpose.msra.mxu0 0
        %371 = vmatprep.subr.bf16.mxu0 0
        %372 = vmatpush1.bf16.xpose.msra.mxu0 0
        %373 = vmatprep.subr.bf16.mxu0 0
        %374 = vmatpush1.bf16.xpose.msra.mxu0 0
        %375 = vmatprep.subr.bf16.mxu0 0
        %376 = vmatpush1.bf16.xpose.msra.mxu0 0
        %377 = vmatprep.subr.bf16.mxu0 0
        %378 = vmatpush1.bf16.xpose.msra.mxu0 0
        %379 = vmatprep.mubr.bf16.mxu0 0
        %380 = vmatmul.mubr.bf16.gmra.mrb[0].mxu0 %v345
        %v381 = vpop.f32.mrb[0].mxu0
        %v382 = vadd.f32 0.0, %v381
        %v383 = vpop.f32.mrb[0].mxu0
        %v384 = vpop.f32.mrb[0].mxu0
        %v385 = vpop.f32.mrb[0].mxu0
        %386 = vdwg.mxu0
        %vm387 = vcmask 64512
        %v388 = vsel %vm387, %v382, -inf
        %389 = vmax.xlane.f32.xlu0 %v388
        %v390 = vpop.xlane.xlu0 %389
        %v391 = vsub.f32 %v382, %v390
        %v392 = vmul.f32 %v391, 1.442695
        %v393 = vpow.pop %v392
        %v394 = vsel %vm387, %v393, 0.0
        %395 = vadd.xlane.f32.xlu0 %v394
        %v396 = vpop.xlane.xlu0 %395
        %v397 = vpack.c.bf16 %v393, %v393
        %v398 = vpack.c.bf16 %v340, %v340
        %v400 = vsel %vm387, %v397, 0
        %vm402 = vcmask 1043456
        %v404 = vsel %vm402, %v398, 0
        %406 = vmatprep.subr.bf16.mxu0 0
        %407 = vmatpush1.bf16.msra.mxu0 %v404
        %408 = vmatprep.subr.bf16.mxu0 0
        %409 = vmatpush1.bf16.msra.mxu0 0
        %410 = vmatprep.subr.bf16.mxu0 0
        %411 = vmatpush1.bf16.msra.mxu0 0
        %412 = vmatprep.subr.bf16.mxu0 0
        %413 = vmatpush1.bf16.msra.mxu0 0
        %414 = vmatprep.subr.bf16.mxu0 0
        %415 = vmatpush1.bf16.msra.mxu0 0
        %416 = vmatprep.subr.bf16.mxu0 0
        %417 = vmatpush1.bf16.msra.mxu0 0
        %418 = vmatprep.subr.bf16.mxu0 0
        %419 = vmatpush1.bf16.msra.mxu0 0
        %420 = vmatprep.subr.bf16.mxu0 0
        %421 = vmatpush1.bf16.msra.mxu0 0
        %422 = vmatprep.subr.bf16.mxu0 0
        %423 = vmatpush1.bf16.msra.mxu0 0
        %424 = vmatprep.subr.bf16.mxu0 0
        %425 = vmatpush1.bf16.msra.mxu0 0
        %426 = vmatprep.subr.bf16.mxu0 0
        %427 = vmatpush1.bf16.msra.mxu0 0
        %428 = vmatprep.subr.bf16.mxu0 0
        %429 = vmatpush1.bf16.msra.mxu0 0
        %430 = vmatprep.subr.bf16.mxu0 0
        %431 = vmatpush1.bf16.msra.mxu0 0
        %432 = vmatprep.subr.bf16.mxu0 0
        %433 = vmatpush1.bf16.msra.mxu0 0
        %434 = vmatprep.subr.bf16.mxu0 0
        %435 = vmatpush1.bf16.msra.mxu0 0
        %436 = vmatprep.subr.bf16.mxu0 0
        %437 = vmatpush1.bf16.msra.mxu0 0
        %438 = vmatprep.mubr.bf16.mxu0 0
        %439 = vmatmul.mubr.bf16.gmra.mrb[0].mxu0 %v400
        %v440 = vpop.f32.mrb[0].mxu0
        %v441 = vadd.f32 0.0, %v440
        %v442 = vpop.f32.mrb[0].mxu0
        %v443 = vpop.f32.mrb[0].mxu0
        %v444 = vpop.f32.mrb[0].mxu0
        %445 = vdwg.mxu0
        %v446 = vrcp.pop %v396
        %v447 = vmul.f32 %v441, %v446
        %448 = vst.msk [vmem:[%s200] sm:$0xff] %vm260, %v447
        %s449 = sand.u32 %s97, 1
        %s450 = scalar_lea.sflag [#allocation4], %s449
        %s451 = sand.u32 %s97, 1
        %s452 = smul.addr %s451, 8
        %s453 = scalar_lea.vmem [#allocation7], %s452
        // Predicated region
        $region41: #{tpu_custom_call.1} parent=31 // pred_check
          %p454 = pneg %p107
        $region42: #{tpu_custom_call.1} parent=31 // pred_check_branch
          %456 = sbr.rel (%p454) target = $region44
        $region43: #{tpu_custom_call.1} parent=31 // pred_region
          %s458 = ssub.s32 128, 128
          %459 = vsyncadd %s450, %s458
          %s460 = smul.addr %s21, 128
          %s461 = scalar_lea.hbm %s3, %s460
          %s463 = sshll.u32 %s453, 4
          %s464 = int_to_ptr.vmem [resolvable:$true] %s463
          %466 = dma.vmem_to_hbm [thread:$0]  %s464, 128, %s461, %s450
        $region44: #{tpu_custom_call.1} parent=31 // pred_fallthru
          _
      $region32: #{tpu_custom_call.1} parent=5 // pred_fallthru
        _
      %p467 = scmp.le.s32.totalorder 2, %s16
      // Predicated region
      $region45: #{tpu_custom_call.1} parent=5 // pred_check
        %p468 = pneg %p467
      $region46: #{tpu_custom_call.1} parent=5 // pred_check_branch
        %470 = sbr.rel (%p468) target = $region48
      $region47: #{tpu_custom_call.1} parent=5 // pred_region
        %s471 = ssub.s32 %s16, 2
        // Predicated region
        $region49: #{tpu_custom_call.1} parent=47 // pred_check
          %p472 = pneg %p113
        $region50: #{tpu_custom_call.1} parent=47 // pred_check_branch
          %474 = sbr.rel (%p472) target = $region52
        $region51: #{tpu_custom_call.1} parent=47 // pred_region
          %s475 = sand.u32 %s98, 1
          %s476 = scalar_lea.sflag [#allocation4], %s475
          %s477 = sand.u32 %s98, 1
          %s478 = smul.addr %s477, 8
          %s479 = scalar_lea.vmem [#allocation7], %s478
          %480 = dma.done %s476, 128
        $region52: #{tpu_custom_call.1} parent=47 // pred_fallthru
          _
      $region48: #{tpu_custom_call.1} parent=5 // pred_fallthru
        _
    $region6: #{tpu_custom_call.1} parent=1 // loop_footer
      %s20 = sadd.s32 1, %s16
    $region7: #{tpu_custom_call.1} parent=1 // loop_footer_branch
      %15 = sbr.rel target = $region3
    $region8: #{tpu_custom_call.1} parent=1 // loop_exit
      _
    %481 = vsyncpa [#allocation3], 1
    %s482 = scalar_lea.sflag [#allocation3], 1
    %483 = vsyncpa %s482, 1
    %484 = vsyncpa [#allocation6], 1
    %485 = vsyncpa [#allocation4], 1
    %s486 = scalar_lea.sflag [#allocation4], 1
    %487 = vsyncpa %s486, 1

</llo_original>
